<compile_context>
chip_gen: v5e
topology: v5e:2x2
jax: 0.10.0
libtpu: 0.0.40
codegen_flags: <defaults>
</compile_context>

<pallas_src>
import functools
import math

import jax
import jax.numpy as jnp
from jax.experimental import pallas as pl
from jax.experimental.pallas import tpu as pltpu


def _gelu_exact(x):
    # exact gelu: 0.5 * x * (1 + erf(x / sqrt(2)))  (matches F.gelu default)
    return 0.5 * x * (1.0 + jax.lax.erf(x * (1.0 / math.sqrt(2.0))))


def _round_up(x, m):
    return (x + m - 1) // m * m


# --------------------------------------------------------------------------
# Generation-aware VMEM budget / tile planning
# --------------------------------------------------------------------------

def _vmem_budget():
    """Returns (usable VMEM bytes for this kernel, two_tensorcores_hint)."""
    try:
        cap = int(pltpu.get_tpu_info().vmem_capacity_bytes)
    except Exception:
        cap = 64 * 1024 * 1024  # conservative default (v7x-like per-TC size)
    if cap >= 100 * 1024 * 1024:
        # v4 / v5e / v6e: 128 MiB physical, single TensorCore per chip.
        return 104 * 1024 * 1024, False
    # v7x-like: 64 MiB per TC is the *physical* size; leave headroom for
    # compiler-internal scratch and the f32 intermediate temp.
    return 52 * 1024 * 1024, True


def plan_ffn(H, I, x_dtype, out_dtype, compute_dtype):
    """Pick (tm, ti) tiles and VMEM limit for this generation / problem size."""
    cbytes = jnp.dtype(compute_dtype).itemsize
    xbytes = jnp.dtype(x_dtype).itemsize
    obytes = jnp.dtype(out_dtype).itemsize
    budget, two_cores = _vmem_budget()
    row_align = 16 if cbytes == 2 else 8

    def footprint(tm, ti, multi_j):
        b = 0
        b += 2 * tm * H * xbytes               # x tiles (double-buffered, input dtype)
        b += 2 * H * ti * cbytes               # W1^T tiles
        b += 2 * ti * H * cbytes               # W2^T tiles
        b += 2 * (ti + H) * 4                  # bias tiles (f32)
        b += 2 * tm * H * obytes               # output tiles
        b += tm * ti * 4 + tm * ti * cbytes    # f32 h + compute-dtype copy
        if multi_j:
            b += tm * H * 4                    # f32 accumulator scratch
        return int(b * 1.25)                   # headroom for compiler scratch

    tm_candidates = (512, 384, 256, 128, 64) if two_cores \
        else (1024, 768, 512, 384, 256, 128, 64)

    def make(tm, ti, multi_j):
        fp = footprint(tm, ti, multi_j)
        vmem_limit = int(min(budget, max(2 * fp, 32 * 1024 * 1024)))
        return dict(tm=tm, ti=ti, I_pad=(I if not multi_j else _round_up(I, ti)),
                    multi_j=multi_j, vmem_limit=vmem_limit,
                    row_align=row_align, two_cores=two_cores)

    # 1) Prefer collapsing the reduction axis (weights resident, DMA'd once,
    #    no accumulator) at the largest token tile that fits.
    for tm in tm_candidates:
        if footprint(tm, I, False) <= budget:
            return make(tm, I, False)

    # 2) Otherwise tile the intermediate dim; prefer the biggest ti that fits
    #    (fewer j steps => less accumulator traffic / grid overhead).
    for tm in tm_candidates:
        for ti in (2048, 1024, 512, 256, 128):
            if ti > I:
                continue
            if footprint(tm, ti, True) <= budget:
                return make(tm, ti, True)

    # 3) Last resort (pathologically large H): smallest tiles, let Mosaic cope.
    ti = I if I <= 128 else 128
    return make(64, ti, ti < I)


# --------------------------------------------------------------------------
# Weight preparation (hoist out of the hot path; call once per model)
# --------------------------------------------------------------------------

def prepare_ffn_weights(w1, b1, w2, b2, plan, compute_dtype):
    """w1: (I, H) nn.Linear layout; w2: (H, I). Transpose / cast / pad once."""
    I_pad = plan["I_pad"]
    w1_t = jnp.asarray(w1).T.astype(compute_dtype)      # (H, I)
    w2_t = jnp.asarray(w2).T.astype(compute_dtype)      # (I, H)
    b1f = jnp.asarray(b1).astype(jnp.float32)
    b2f = jnp.asarray(b2).astype(jnp.float32)
    I = w1_t.shape[1]
    if I_pad != I:
        # exact padding: gelu(0 + 0) = 0 and zero rows of W2 contribute nothing
        w1_t = jnp.pad(w1_t, ((0, 0), (0, I_pad - I)))
        w2_t = jnp.pad(w2_t, ((0, I_pad - I), (0, 0)))
        b1f = jnp.pad(b1f, ((0, I_pad - I),))
    return w1_t, b1f.reshape(1, I_pad), w2_t, b2f.reshape(1, -1)


# --------------------------------------------------------------------------
# Kernels
# --------------------------------------------------------------------------

def _ffn_kernel_single(x_ref, w1_ref, b1_ref, w2_ref, b2_ref, o_ref, *,
                       compute_dtype, precision):
    """Single reduction step: full I resident, no accumulator, direct write."""
    x = x_ref[...].astype(compute_dtype)
    h = jnp.dot(x, w1_ref[...], preferred_element_type=jnp.float32,
                precision=precision)                       # (tm, I) f32
    h = _gelu_exact(h + b1_ref[...])                       # f32 bias + erf gelu
    y = jnp.dot(h.astype(compute_dtype), w2_ref[...],
                preferred_element_type=jnp.float32, precision=precision)
    o_ref[...] = (y + b2_ref[...]).astype(o_ref.dtype)


def _ffn_kernel_multi(x_ref, w1_ref, b1_ref, w2_ref, b2_ref, o_ref, acc_ref, *,
                      compute_dtype, precision):
    """Grid = (token tiles, intermediate tiles); j (reduction) is innermost."""
    j = pl.program_id(1)
    nj = pl.num_programs(1)

    x = x_ref[...].astype(compute_dtype)
    h = jnp.dot(x, w1_ref[...], preferred_element_type=jnp.float32,
                precision=precision)                       # (tm, ti) f32
    h = _gelu_exact(h + b1_ref[...])
    partial = jnp.dot(h.astype(compute_dtype), w2_ref[...],
                      preferred_element_type=jnp.float32,
                      precision=precision)                 # (tm, H) f32

    @pl.when(j == 0)
    def _first():                       # no zero-fill pass
        acc_ref[...] = partial

    @pl.when(jnp.logical_and(j > 0, j < nj - 1))
    def _middle():
        acc_ref[...] += partial

    @pl.when(j == nj - 1)
    def _last():                        # fuse final partial + bias into the store
        o_ref[...] = (acc_ref[...] + partial + b2_ref[...]).astype(o_ref.dtype)


# --------------------------------------------------------------------------
# Wrapper
# --------------------------------------------------------------------------

def ffn_apply(x, w1_t, b1_2d, w2_t, b2_2d, plan, compute_dtype):
    """x: (B, S, H); w1_t: (H, I_pad); b1_2d: (1, I_pad); w2_t: (I_pad, H); b2_2d: (1, H)."""
    B, S, H = x.shape
    I_pad = plan["I_pad"]
    ti_eff = plan["ti"]
    row_align = plan["row_align"]
    M = B * S

    # Token (row) tile: as large as planned, but never larger than the
    # (aligned) token count so tiny inputs don't get padded to the plan size.
    tm_eff = min(plan["tm"], _round_up(M, row_align))
    # Two-TensorCore chips (v7x): make sure the "parallel" axis has >= 2 tiles.
    if plan["two_cores"] and M > row_align and _round_up(M, tm_eff) // tm_eff < 2:
        tm_eff = max(row_align, _round_up(pl.cdiv(M, 2), row_align))
    M_pad = _round_up(M, tm_eff)

    x2d = x.reshape(M, H)
    if M_pad != M:
        x2d = jnp.pad(x2d, ((0, M_pad - M), (0, 0)))   # padded rows are exact (gelu(0)=0)

    f32_path = jnp.dtype(compute_dtype) == jnp.dtype(jnp.float32)
    precision = jax.lax.Precision.HIGHEST if f32_path else None

    grid_i = M_pad // tm_eff
    multi_j = plan["multi_j"]
    grid_j = (I_pad // ti_eff) if multi_j else 1
    grid = (grid_i, grid_j)

    in_specs = [
        pl.BlockSpec((tm_eff, H), lambda i, j: (i, 0)),    # x tile (cast in kernel)
        pl.BlockSpec((H, ti_eff), lambda i, j: (0, j)),    # W1^T slice
        pl.BlockSpec((1, ti_eff), lambda i, j: (0, j)),    # b1 slice (f32)
        pl.BlockSpec((ti_eff, H), lambda i, j: (j, 0)),    # W2^T slice
        pl.BlockSpec((1, H), lambda i, j: (0, 0)),         # b2 (f32)
    ]
    out_spec = pl.BlockSpec((tm_eff, H), lambda i, j: (i, 0))

    if multi_j:
        kernel = functools.partial(_ffn_kernel_multi,
                                   compute_dtype=compute_dtype,
                                   precision=precision)
        scratch_shapes = [pltpu.VMEM((tm_eff, H), jnp.float32)]
    else:
        kernel = functools.partial(_ffn_kernel_single,
                                   compute_dtype=compute_dtype,
                                   precision=precision)
        scratch_shapes = []

    out2d = pl.pallas_call(
        kernel,
        out_shape=jax.ShapeDtypeStruct((M_pad, H), x.dtype),
        grid_spec=pltpu.PrefetchScalarGridSpec(
            num_scalar_prefetch=0,
            grid=grid,
            in_specs=in_specs,
            out_specs=out_spec,
            scratch_shapes=scratch_shapes,
        ),
        compiler_params=pltpu.CompilerParams(
            dimension_semantics=("parallel", "arbitrary"),
            vmem_limit_bytes=plan["vmem_limit"],
        ),
    )(x2d, w1_t, b1_2d, w2_t, b2_2d)

    if M_pad != M:
        out2d = out2d[:M]
    return out2d.reshape(B, S, H)


def feed_forward_network(x, w1, b1, w2, b2, *, compute_dtype=jnp.bfloat16):
    """Convenience one-shot wrapper. w1: (I, H), w2: (H, I) (nn.Linear layout)."""
    H = x.shape[-1]
    I = w1.shape[0]
    plan = plan_ffn(H, I, x.dtype, x.dtype, compute_dtype)
    params = prepare_ffn_weights(w1, b1, w2, b2, plan, compute_dtype)
    return ffn_apply(x, *params, plan, compute_dtype)


def reference_ffn(x2d, w1, b1, w2, b2):
    h = x2d.astype(jnp.float32) @ w1.astype(jnp.float32).T + b1
    h = _gelu_exact(h)
    return h @ w2.astype(jnp.float32).T + b2


# --------------------------------------------------------------------------
# Demo / self-test
# --------------------------------------------------------------------------

if __name__ == "__main__":
    # Config (synthetic): hidden_size=128, intermediate_size=256, gelu,
    # use_bias=True, hidden_dropout inactive (eval).
    batch, seq, hidden, intermediate = 2, 8, 128, 256
    initializer_range = 0.02

    key = jax.random.PRNGKey(0)
    kx, kw1, kw2 = jax.random.split(key, 3)

    x = jax.random.normal(kx, (batch, seq, hidden), dtype=jnp.float32)

    # nn.Linear weights: (out, in), normal(0, initializer_range); bias zeros.
    w1 = initializer_range * jax.random.normal(
        kw1, (intermediate, hidden), dtype=jnp.float32)
    b1 = jnp.zeros((intermediate,), dtype=jnp.float32)
    w2 = initializer_range * jax.random.normal(
        kw2, (hidden, intermediate), dtype=jnp.float32)
    b2 = jnp.zeros((hidden,), dtype=jnp.float32)

    ref = reference_ffn(x.reshape(-1, hidden), w1, b1, w2, b2).reshape(
        batch, seq, hidden)

    # --- performance path: bf16 matmuls, f32 accumulation, hoisted weight prep
    plan_bf16 = plan_ffn(hidden, intermediate, x.dtype, x.dtype, jnp.bfloat16)
    params_bf16 = prepare_ffn_weights(w1, b1, w2, b2, plan_bf16, jnp.bfloat16)
    out_bf16 = ffn_apply(x, *params_bf16, plan_bf16, jnp.bfloat16)
    out_bf16 = jax.block_until_ready(out_bf16)
    assert out_bf16.shape == (batch, seq, hidden)
    assert jnp.allclose(out_bf16, ref, atol=3e-2, rtol=3e-2), \
        "bf16 path mismatch vs reference"

    # --- f32 path (precision=HIGHEST on the MXU): matches the PyTorch f32 math
    out_f32 = feed_forward_network(x, w1, b1, w2, b2, compute_dtype=jnp.float32)
    out_f32 = jax.block_until_ready(out_f32)
    assert out_f32.shape == (batch, seq, hidden)
    assert jnp.allclose(out_f32, ref, atol=1e-5, rtol=1e-5), \
        "f32 path mismatch vs reference"

    print("KERNEL_OK")
</pallas_src>

<mosaic_0001>
module attributes {stable_mosaic.version = 11 : i64} {
  func.func @_ffn_kernel_single(%arg0: i32, %arg1: i32, %arg2: memref<16x128xf32, #tpu.memory_space<vmem>>, %arg3: memref<128x256xbf16, #tpu.memory_space<vmem>>, %arg4: memref<1x256xf32, #tpu.memory_space<vmem>>, %arg5: memref<256x128xbf16, #tpu.memory_space<vmem>>, %arg6: memref<1x128xf32, #tpu.memory_space<vmem>>, %arg7: memref<16x128xf32, #tpu.memory_space<vmem>>) attributes {dimension_semantics = [#tpu.dimension_semantics<parallel>, #tpu.dimension_semantics<arbitrary>], iteration_bounds = array<i64: 1, 1>, scalar_prefetch = 0 : i64, scratch_operands = 0 : i64, tpu.core_type = #tpu.core_type<tc>, window_params = [{transform_indices = @transform_0, window_bounds = array<i64: 16, 128>}, {transform_indices = @transform_1, window_bounds = array<i64: 128, 256>}, {transform_indices = @transform_2, window_bounds = array<i64: 1, 256>}, {transform_indices = @transform_3, window_bounds = array<i64: 256, 128>}, {pipeline_mode = #tpu.pipeline_mode<synchronous>, transform_indices = @transform_4, window_bounds = array<i64: 1, 128>}, {transform_indices = @transform_5, window_bounds = array<i64: 16, 128>}]} {
    %c0 = arith.constant 0 : index
    %c0_0 = arith.constant 0 : index
    %0 = vector.load %arg2[%c0, %c0_0] : memref<16x128xf32, #tpu.memory_space<vmem>>, vector<16x128xf32>
    %1 = arith.truncf %0 : vector<16x128xf32> to vector<16x128xbf16>
    %c0_1 = arith.constant 0 : index
    %c0_2 = arith.constant 0 : index
    %2 = vector.load %arg3[%c0_1, %c0_2] : memref<128x256xbf16, #tpu.memory_space<vmem>>, vector<128x256xbf16>
    %cst = arith.constant dense<0.000000e+00> : vector<16x256xf32>
    %3 = tpu.matmul %1, %2, %cst {dimension_numbers = #tpu.dot_dimension_numbers<[1], [0], [0], [1], [0, 0, 1, 1], [], []>} : vector<16x128xbf16>, vector<128x256xbf16>, vector<16x256xf32> -> vector<16x256xf32>
    %c0_3 = arith.constant 0 : index
    %c0_4 = arith.constant 0 : index
    %4 = vector.load %arg4[%c0_3, %c0_4] : memref<1x256xf32, #tpu.memory_space<vmem>>, vector<1x256xf32>
    %5 = vector.broadcast %4 : vector<1x256xf32> to vector<16x256xf32>
    %6 = arith.addf %3, %5 : vector<16x256xf32>
    %cst_5 = arith.constant 5.000000e-01 : f32
    %7 = vector.broadcast %cst_5 : f32 to vector<16x256xf32>
    %8 = arith.mulf %7, %6 : vector<16x256xf32>
    %cst_6 = arith.constant 0.707106769 : f32
    %9 = vector.broadcast %cst_6 : f32 to vector<16x256xf32>
    %10 = arith.mulf %6, %9 : vector<16x256xf32>
    %11 = math.erf %10 : vector<16x256xf32>
    %cst_7 = arith.constant 1.000000e+00 : f32
    %12 = vector.broadcast %cst_7 : f32 to vector<16x256xf32>
    %13 = arith.addf %12, %11 : vector<16x256xf32>
    %14 = arith.mulf %8, %13 : vector<16x256xf32>
    %15 = arith.truncf %14 : vector<16x256xf32> to vector<16x256xbf16>
    %c0_8 = arith.constant 0 : index
    %c0_9 = arith.constant 0 : index
    %16 = vector.load %arg5[%c0_8, %c0_9] : memref<256x128xbf16, #tpu.memory_space<vmem>>, vector<256x128xbf16>
    %cst_10 = arith.constant dense<0.000000e+00> : vector<16x128xf32>
    %17 = tpu.matmul %15, %16, %cst_10 {dimension_numbers = #tpu.dot_dimension_numbers<[1], [0], [0], [1], [0, 0, 1, 1], [], []>} : vector<16x256xbf16>, vector<256x128xbf16>, vector<16x128xf32> -> vector<16x128xf32>
    %c0_11 = arith.constant 0 : index
    %c0_12 = arith.constant 0 : index
    %18 = vector.load %arg6[%c0_11, %c0_12] : memref<1x128xf32, #tpu.memory_space<vmem>>, vector<1x128xf32>
    %19 = vector.broadcast %18 : vector<1x128xf32> to vector<16x128xf32>
    %20 = arith.addf %17, %19 : vector<16x128xf32>
    %c0_13 = arith.constant 0 : index
    %c0_14 = arith.constant 0 : index
    %21 = vector.load %arg7[%c0_13, %c0_14] : memref<16x128xf32, #tpu.memory_space<vmem>>, vector<16x128xf32>
    tpu.vector_store %arg7[%c0_13, %c0_14], %20 {strides = array<i32>} : memref<16x128xf32, #tpu.memory_space<vmem>>, vector<16x128xf32>,
    return
  }
  func.func @transform_0(%arg0: i32, %arg1: i32) -> (i32, i32) {
    %c0_i32 = arith.constant 0 : i32
    %c0_i32_0 = arith.constant 0 : i32
    return %arg0, %c0_i32 : i32, i32
  }
  func.func @transform_1(%arg0: i32, %arg1: i32) -> (i32, i32) {
    %c0_i32 = arith.constant 0 : i32
    %c0_i32_0 = arith.constant 0 : i32
    return %c0_i32, %arg1 : i32, i32
  }
  func.func @transform_2(%arg0: i32, %arg1: i32) -> (i32, i32) {
    %c0_i32 = arith.constant 0 : i32
    %c0_i32_0 = arith.constant 0 : i32
    return %c0_i32, %arg1 : i32, i32
  }
  func.func @transform_3(%arg0: i32, %arg1: i32) -> (i32, i32) {
    %c0_i32 = arith.constant 0 : i32
    %c0_i32_0 = arith.constant 0 : i32
    return %arg1, %c0_i32 : i32, i32
  }
  func.func @transform_4(%arg0: i32, %arg1: i32) -> (i32, i32) {
    %c0_i32 = arith.constant 0 : i32
    %c0_i32_0 = arith.constant 0 : i32
    %c0_i32_1 = arith.constant 0 : i32
    return %c0_i32, %c0_i32_0 : i32, i32
  }
  func.func @transform_5(%arg0: i32, %arg1: i32) -> (i32, i32) {
    %c0_i32 = arith.constant 0 : i32
    %c0_i32_0 = arith.constant 0 : i32
    return %arg0, %c0_i32 : i32, i32
  }
}

</mosaic_0001>

<llo_original>
// kernel: tpu_custom_call.1
$region0: #{tpu_custom_call.1}
  #allocation0 [shape = 'u32[]', space=smem, size = 0x4, offset = 0x4, fixed_abs, tag = 'smem constant byte address 0x4 - core index']
  #allocation1 [shape = 'u32[72,128]{1,0:T(1,128)}', space=vmem, size = 0x9000, scoped, tag = 'internal scratch']
  %s0 = inlined_call_operand.hbm [shape: f32[16,128], index: 0, kind: input, shape index: {}]
  %s1 = inlined_call_operand.hbm [shape: bf16[128,256], index: 1, kind: input, shape index: {}]
  %s2 = inlined_call_operand.hbm [shape: f32[1,256], index: 2, kind: input, shape index: {}]
  %s3 = inlined_call_operand.hbm [shape: bf16[256,128], index: 3, kind: input, shape index: {}]
  %s4 = inlined_call_operand.vmem [shape: f32[1,128], index: 4, kind: input, shape index: {}]
  %s5 = inlined_call_operand.hbm [shape: f32[16,128], index: 5, kind: output, shape index: {}]
  %s6 = sld [smem:[#allocation0]]
  $region46: #{tpu_custom_call.1} parent=0
    _
  %s8 = ssub.s32 1, %s6
  %s9 = scalar_select 0, %s8, %s6
  $region1: #{tpu_custom_call.1} parent=0
    #allocation2 [shape = 'u8[8192]{0}', space=vmem, size = 0x2000, scoped, tag = 'input window, operand 0, single buffered']
    #allocation3 [shape = 's32[1]{0}', space=sflag, size = 0x4, scoped, tag = 'scoped memory for tpu_custom_call.1']
    #allocation4 [shape = 's32[1]{0}', space=sflag, size = 0x4, scoped, tag = 'scoped memory for tpu_custom_call.1']
    #allocation5 [shape = 'u8[65536]{0}', space=vmem, size = 0x10000, scoped, tag = 'input window, operand 1, single buffered']
    #allocation6 [shape = 's32[1]{0}', space=sflag, size = 0x4, scoped, tag = 'scoped memory for tpu_custom_call.1']
    #allocation7 [shape = 'u8[1024]{0}', space=vmem, size = 0x400, scoped, tag = 'input window, operand 2, single buffered']
    #allocation8 [shape = 'u8[65536]{0}', space=vmem, size = 0x10000, scoped, tag = 'input window, operand 3, single buffered']
    #allocation9 [shape = 's32[1]{0}', space=sflag, size = 0x4, scoped, tag = 'scoped memory for tpu_custom_call.1']
    #allocation10 [shape = 'u8[8192]{0}', space=vmem, size = 0x2000, scoped, tag = 'output window, operand 0, single buffered']
    %10 = vsyncpa [#allocation3], 0
    %11 = vsyncpa [#allocation6], 0
    %12 = vsyncpa [#allocation9], 0
    %13 = vsyncpa [#allocation4], 0
    // Predicated region
    $region2: #{tpu_custom_call.1} parent=1 // pred_check
      _
    $region3: #{tpu_custom_call.1} parent=1 // pred_check_branch
      %15 = sbr.rel (0) target = $region5
    $region4: #{tpu_custom_call.1} parent=1 // pred_region
      %17 = vsyncadd [#allocation3], 0
      %s18 = sshll.u32 %s0, 4
      %s19 = int_to_ptr.hbm [resolvable:$true] %s18
      %s20 = sshll.u32 [#allocation2], 4
      %s21 = int_to_ptr.vmem [resolvable:$true] %s20
      %26 = dma.hbm_to_vmem [thread:$0]  %s19, 256, %s21, [#allocation3], 128, 128, 8
    $region5: #{tpu_custom_call.1} parent=1 // pred_fallthru
      _
    // Predicated region
    $region6: #{tpu_custom_call.1} parent=1 // pred_check
      _
    $region7: #{tpu_custom_call.1} parent=1 // pred_check_branch
      %28 = sbr.rel (0) target = $region9
    $region8: #{tpu_custom_call.1} parent=1 // pred_region
      %30 = vsyncadd [#allocation6], 0
      %s31 = sshll.u32 %s1, 4
      %s32 = int_to_ptr.hbm [resolvable:$true] %s31
      %s33 = sshll.u32 [#allocation5], 4
      %s34 = int_to_ptr.vmem [resolvable:$true] %s33
      %39 = dma.hbm_to_vmem [thread:$0]  %s32, 2048, %s34, [#allocation6], 128, 128, 8
    $region9: #{tpu_custom_call.1} parent=1 // pred_fallthru
      _
    // Predicated region
    $region10: #{tpu_custom_call.1} parent=1 // pred_check
      _
    $region11: #{tpu_custom_call.1} parent=1 // pred_check_branch
      %41 = sbr.rel (0) target = $region13
    $region12: #{tpu_custom_call.1} parent=1 // pred_region
      %43 = vsyncadd [#allocation6], 0
      %s45 = sshll.u32 %s2, 4
      %s46 = int_to_ptr.hbm [resolvable:$true] %s45
      %s47 = sshll.u32 [#allocation7], 4
      %s48 = int_to_ptr.vmem [resolvable:$true] %s47
      %50 = dma.hbm_to_vmem [thread:$0]  %s46, 32, %s48, [#allocation6]
    $region13: #{tpu_custom_call.1} parent=1 // pred_fallthru
      _
    // Predicated region
    $region14: #{tpu_custom_call.1} parent=1 // pred_check
      _
    $region15: #{tpu_custom_call.1} parent=1 // pred_check_branch
      %52 = sbr.rel (0) target = $region17
    $region16: #{tpu_custom_call.1} parent=1 // pred_region
      %54 = vsyncadd [#allocation9], 0
      %s55 = sshll.u32 %s3, 4
      %s56 = int_to_ptr.hbm [resolvable:$true] %s55
      %s57 = sshll.u32 [#allocation8], 4
      %s58 = int_to_ptr.vmem [resolvable:$true] %s57
      %63 = dma.hbm_to_vmem [thread:$0]  %s56, 2048, %s58, [#allocation9], 64, 64, 4
    $region17: #{tpu_custom_call.1} parent=1 // pred_fallthru
      _
    // Predicated region
    $region18: #{tpu_custom_call.1} parent=1 // pred_check
      _
    $region19: #{tpu_custom_call.1} parent=1 // pred_check_branch
      %65 = sbr.rel (0) target = $region21
    $region20: #{tpu_custom_call.1} parent=1 // pred_region
      _
    $region21: #{tpu_custom_call.1} parent=1 // pred_fallthru
      _
    // Predicated region
    $region22: #{tpu_custom_call.1} parent=1 // pred_check
      _
    $region23: #{tpu_custom_call.1} parent=1 // pred_check_branch
      %67 = sbr.rel (0) target = $region25
    $region24: #{tpu_custom_call.1} parent=1 // pred_region
      %69 = dma.done [#allocation3], 256
    $region25: #{tpu_custom_call.1} parent=1 // pred_fallthru
      _
    // Predicated region
    $region26: #{tpu_custom_call.1} parent=1 // pred_check
      _
    $region27: #{tpu_custom_call.1} parent=1 // pred_check_branch
      %71 = sbr.rel (0) target = $region29
    $region28: #{tpu_custom_call.1} parent=1 // pred_region
      %73 = dma.done [#allocation6], 2048
    $region29: #{tpu_custom_call.1} parent=1 // pred_fallthru
      _
    // Predicated region
    $region30: #{tpu_custom_call.1} parent=1 // pred_check
      _
    $region31: #{tpu_custom_call.1} parent=1 // pred_check_branch
      %75 = sbr.rel (0) target = $region33
    $region32: #{tpu_custom_call.1} parent=1 // pred_region
      %77 = dma.done [#allocation6], 32
    $region33: #{tpu_custom_call.1} parent=1 // pred_fallthru
      _
    // Predicated region
    $region34: #{tpu_custom_call.1} parent=1 // pred_check
      _
    $region35: #{tpu_custom_call.1} parent=1 // pred_check_branch
      %79 = sbr.rel (0) target = $region37
    $region36: #{tpu_custom_call.1} parent=1 // pred_region
      %81 = dma.done [#allocation9], 2048
    $region37: #{tpu_custom_call.1} parent=1 // pred_fallthru
      _
    %v82 = vld [vmem:[#allocation2] sm:$0xff]
    %v83 = vld [vmem:[#allocation2 + $0x8] sm:$0xff]
    %v84 = vpack.c.bf16 %v83, %v82
    %v85 = vld [vmem:[#allocation5] sm:$0xff]
    %v86 = vld [vmem:[#allocation5 + $0x8] sm:$0xff]
    %v87 = vld [vmem:[#allocation5 + $0x10] sm:$0xff]
    %v88 = vld [vmem:[#allocation5 + $0x18] sm:$0xff]
    %v89 = vld [vmem:[#allocation5 + $0x20] sm:$0xff]
    %v90 = vld [vmem:[#allocation5 + $0x28] sm:$0xff]
    %v91 = vld [vmem:[#allocation5 + $0x30] sm:$0xff]
    %v92 = vld [vmem:[#allocation5 + $0x38] sm:$0xff]
    %v93 = vld [vmem:[#allocation5 + $0x40] sm:$0xff]
    %v94 = vld [vmem:[#allocation5 + $0x48] sm:$0xff]
    %v95 = vld [vmem:[#allocation5 + $0x50] sm:$0xff]
    %v96 = vld [vmem:[#allocation5 + $0x58] sm:$0xff]
    %v97 = vld [vmem:[#allocation5 + $0x60] sm:$0xff]
    %v98 = vld [vmem:[#allocation5 + $0x68] sm:$0xff]
    %v99 = vld [vmem:[#allocation5 + $0x70] sm:$0xff]
    %v100 = vld [vmem:[#allocation5 + $0x78] sm:$0xff]
    %v101 = vld [vmem:[#allocation7] sm:$0x3]
    %v103 = vperm.slane %v101, 0
    %v104 = vperm.slane %v101, 1
    %v123 = vunpack.c.l.b16 %v85
    %v124 = vunpack.c.h.b16 %v85
    %v125 = vunpack.c.l.b16 %v86
    %v126 = vunpack.c.h.b16 %v86
    %v127 = vunpack.c.l.b16 %v87
    %v128 = vunpack.c.h.b16 %v87
    %v129 = vunpack.c.l.b16 %v88
    %v130 = vunpack.c.h.b16 %v88
    %v131 = vunpack.c.l.b16 %v89
    %v132 = vunpack.c.h.b16 %v89
    %v133 = vunpack.c.l.b16 %v90
    %v134 = vunpack.c.h.b16 %v90
    %v135 = vunpack.c.l.b16 %v91
    %v136 = vunpack.c.h.b16 %v91
    %v137 = vunpack.c.l.b16 %v92
    %v138 = vunpack.c.h.b16 %v92
    %v139 = vunpack.c.l.b16 %v93
    %v140 = vunpack.c.h.b16 %v93
    %v141 = vunpack.c.l.b16 %v94
    %v142 = vunpack.c.h.b16 %v94
    %v143 = vunpack.c.l.b16 %v95
    %v144 = vunpack.c.h.b16 %v95
    %v145 = vunpack.c.l.b16 %v96
    %v146 = vunpack.c.h.b16 %v96
    %v147 = vunpack.c.l.b16 %v97
    %v148 = vunpack.c.h.b16 %v97
    %v149 = vunpack.c.l.b16 %v98
    %v150 = vunpack.c.h.b16 %v98
    %v151 = vunpack.c.l.b16 %v99
    %v152 = vunpack.c.h.b16 %v99
    %v153 = vunpack.c.l.b16 %v100
    %v154 = vunpack.c.h.b16 %v100
    %v155 = vpack.c.b16 %v125, %v123
    %v156 = vpack.c.b16 %v126, %v124
    %v157 = vpack.c.b16 %v129, %v127
    %v158 = vpack.c.b16 %v130, %v128
    %v159 = vpack.c.b16 %v133, %v131
    %v160 = vpack.c.b16 %v134, %v132
    %v161 = vpack.c.b16 %v137, %v135
    %v162 = vpack.c.b16 %v138, %v136
    %v163 = vpack.c.b16 %v141, %v139
    %v164 = vpack.c.b16 %v142, %v140
    %v165 = vpack.c.b16 %v145, %v143
    %v166 = vpack.c.b16 %v146, %v144
    %v167 = vpack.c.b16 %v149, %v147
    %v168 = vpack.c.b16 %v150, %v148
    %v169 = vpack.c.b16 %v153, %v151
    %v170 = vpack.c.b16 %v154, %v152
    %187 = vmatpush.bf16.msra.mxu0 %v169
    %188 = vmatpush.bf16.msra.mxu0 %v167
    %189 = vmatpush.bf16.msra.mxu0 %v165
    %190 = vmatpush.bf16.msra.mxu0 %v163
    %191 = vmatpush.bf16.msra.mxu0 %v161
    %192 = vmatpush.bf16.msra.mxu0 %v159
    %193 = vmatpush.bf16.msra.mxu0 %v157
    %194 = vmatpush.bf16.msra.mxu0 %v155
    %195 = vmatmul.bf16.gmra.mxu0 %v84
    %v196 = vpop.f32.mrf.mxu0
    %v197 = vadd.f32 %v103, %v196
    %v198 = vpop.f32.mrf.mxu0
    %v199 = vadd.f32 %v103, %v198
    %200 = vdwg.mxu0
    %201 = vmatpush.bf16.msra.mxu0 %v170
    %202 = vmatpush.bf16.msra.mxu0 %v168
    %203 = vmatpush.bf16.msra.mxu0 %v166
    %204 = vmatpush.bf16.msra.mxu0 %v164
    %205 = vmatpush.bf16.msra.mxu0 %v162
    %206 = vmatpush.bf16.msra.mxu0 %v160
    %207 = vmatpush.bf16.msra.mxu0 %v158
    %208 = vmatpush.bf16.msra.mxu0 %v156
    %209 = vmatmul.bf16.gmra.mxu0 %v84
    %v210 = vpop.f32.mrf.mxu0
    %v211 = vadd.f32 %v104, %v210
    %v212 = vpop.f32.mrf.mxu0
    %v213 = vadd.f32 %v104, %v212
    %214 = vdwg.mxu0
    %v215 = vmul.f32 %v197, 0.5
    %v216 = vmul.f32 %v211, 0.5
    %v217 = vmul.f32 %v199, 0.5
    %v218 = vmul.f32 %v213, 0.5
    %v219 = vmul.f32 %v197, 0.70710677
    %v220 = vmul.f32 %v211, 0.70710677
    %v221 = vmul.f32 %v199, 0.70710677
    %v222 = vmul.f32 %v213, 0.70710677
    %v223 = vmul.f32 %v219, %v219
    %v224 = vmin.f32 16.0, %v223
    %v225 = vmul.f32 %v224, 2.1237322e-06
    %v226 = vadd.f32 %v225, 0.00028619796
    %v227 = vmul.f32 %v224, %v226
    %v228 = vadd.f32 %v227, 0.0036580483
    %v229 = vmul.f32 %v224, %v228
    %v230 = vadd.f32 %v229, 0.05243302
    %v231 = vmul.f32 %v224, %v230
    %v232 = vadd.f32 %v231, 0.18741608
    %v233 = vmul.f32 %v224, %v232
    %v234 = vadd.f32 %v233, 1.1283791
    %v235 = vmul.f32 %v219, %v234
    %v236 = vmul.f32 %v224, 3.8918573e-05
    %v237 = vadd.f32 %v236, 0.001143296
    %v238 = vmul.f32 %v224, %v237
    %v239 = vadd.f32 %v238, 0.014752088
    %v240 = vmul.f32 %v224, %v239
    %v241 = vadd.f32 %v240, 0.112945676
    %v242 = vmul.f32 %v224, %v241
    %v243 = vadd.f32 %v242, 0.4994258
    %v244 = vmul.f32 %v224, %v243
    %v245 = vadd.f32 %v244, 1.0
    %v246 = vrcp.pop %v245
    %v247 = vmul.f32 %v245, %v246
    %v248 = vsub.f32 1.0, %v247
    %v249 = vmul.f32 %v246, %v248
    %v250 = vadd.f32 %v246, %v249
    %vm251 = vweird.f32 %v245
    %vm252 = vweird.f32 %v246
    %vm253 = vmor %vm251, %vm252
    %v254 = vsel %vm253, %v246, %v250
    %v255 = vand.u32 2147483647, %v245
    %vm256 = vcmp.eq.f32.partialorder %v255, 8.507059e+37
    %v257 = vand.u32 %v245, 2147483648
    %v258 = vor.u32 1.1754944e-38, %v257
    %v259 = vsel %vm256, %v258, %v254
    %v260 = vmul.f32 %v235, %v259
    %v261 = vmin.f32 %v260, 1.0
    %v262 = vmax.f32 %v261, -1.0
    %v263 = vmul.f32 %v220, %v220
    %v264 = vmin.f32 16.0, %v263
    %v265 = vmul.f32 %v264, 2.1237322e-06
    %v266 = vadd.f32 %v265, 0.00028619796
    %v267 = vmul.f32 %v264, %v266
    %v268 = vadd.f32 %v267, 0.0036580483
    %v269 = vmul.f32 %v264, %v268
    %v270 = vadd.f32 %v269, 0.05243302
    %v271 = vmul.f32 %v264, %v270
    %v272 = vadd.f32 %v271, 0.18741608
    %v273 = vmul.f32 %v264, %v272
    %v274 = vadd.f32 %v273, 1.1283791
    %v275 = vmul.f32 %v220, %v274
    %v276 = vmul.f32 %v264, 3.8918573e-05
    %v277 = vadd.f32 %v276, 0.001143296
    %v278 = vmul.f32 %v264, %v277
    %v279 = vadd.f32 %v278, 0.014752088
    %v280 = vmul.f32 %v264, %v279
    %v281 = vadd.f32 %v280, 0.112945676
    %v282 = vmul.f32 %v264, %v281
    %v283 = vadd.f32 %v282, 0.4994258
    %v284 = vmul.f32 %v264, %v283
    %v285 = vadd.f32 %v284, 1.0
    %v286 = vrcp.pop %v285
    %v287 = vmul.f32 %v285, %v286
    %v288 = vsub.f32 1.0, %v287
    %v289 = vmul.f32 %v286, %v288
    %v290 = vadd.f32 %v286, %v289
    %vm291 = vweird.f32 %v285
    %vm292 = vweird.f32 %v286
    %vm293 = vmor %vm291, %vm292
    %v294 = vsel %vm293, %v286, %v290
    %v295 = vand.u32 2147483647, %v285
    %vm296 = vcmp.eq.f32.partialorder %v295, 8.507059e+37
    %v297 = vand.u32 %v285, 2147483648
    %v298 = vor.u32 1.1754944e-38, %v297
    %v299 = vsel %vm296, %v298, %v294
    %v300 = vmul.f32 %v275, %v299
    %v301 = vmin.f32 %v300, 1.0
    %v302 = vmax.f32 %v301, -1.0
    %v303 = vmul.f32 %v221, %v221
    %v304 = vmin.f32 16.0, %v303
    %v305 = vmul.f32 %v304, 2.1237322e-06
    %v306 = vadd.f32 %v305, 0.00028619796
    %v307 = vmul.f32 %v304, %v306
    %v308 = vadd.f32 %v307, 0.0036580483
    %v309 = vmul.f32 %v304, %v308
    %v310 = vadd.f32 %v309, 0.05243302
    %v311 = vmul.f32 %v304, %v310
    %v312 = vadd.f32 %v311, 0.18741608
    %v313 = vmul.f32 %v304, %v312
    %v314 = vadd.f32 %v313, 1.1283791
    %v315 = vmul.f32 %v221, %v314
    %v316 = vmul.f32 %v304, 3.8918573e-05
    %v317 = vadd.f32 %v316, 0.001143296
    %v318 = vmul.f32 %v304, %v317
    %v319 = vadd.f32 %v318, 0.014752088
    %v320 = vmul.f32 %v304, %v319
    %v321 = vadd.f32 %v320, 0.112945676
    %v322 = vmul.f32 %v304, %v321
    %v323 = vadd.f32 %v322, 0.4994258
    %v324 = vmul.f32 %v304, %v323
    %v325 = vadd.f32 %v324, 1.0
    %v326 = vrcp.pop %v325
    %v327 = vmul.f32 %v325, %v326
    %v328 = vsub.f32 1.0, %v327
    %v329 = vmul.f32 %v326, %v328
    %v330 = vadd.f32 %v326, %v329
    %vm331 = vweird.f32 %v325
    %vm332 = vweird.f32 %v326
    %vm333 = vmor %vm331, %vm332
    %v334 = vsel %vm333, %v326, %v330
    %v335 = vand.u32 2147483647, %v325
    %vm336 = vcmp.eq.f32.partialorder %v335, 8.507059e+37
    %v337 = vand.u32 %v325, 2147483648
    %v338 = vor.u32 1.1754944e-38, %v337
    %v339 = vsel %vm336, %v338, %v334
    %v340 = vmul.f32 %v315, %v339
    %v341 = vmin.f32 %v340, 1.0
    %v342 = vmax.f32 %v341, -1.0
    %v343 = vmul.f32 %v222, %v222
    %v344 = vmin.f32 16.0, %v343
    %v345 = vmul.f32 %v344, 2.1237322e-06
    %v346 = vadd.f32 %v345, 0.00028619796
    %v347 = vmul.f32 %v344, %v346
    %v348 = vadd.f32 %v347, 0.0036580483
    %v349 = vmul.f32 %v344, %v348
    %v350 = vadd.f32 %v349, 0.05243302
    %v351 = vmul.f32 %v344, %v350
    %v352 = vadd.f32 %v351, 0.18741608
    %v353 = vmul.f32 %v344, %v352
    %v354 = vadd.f32 %v353, 1.1283791
    %v355 = vmul.f32 %v222, %v354
    %v356 = vmul.f32 %v344, 3.8918573e-05
    %v357 = vadd.f32 %v356, 0.001143296
    %v358 = vmul.f32 %v344, %v357
    %v359 = vadd.f32 %v358, 0.014752088
    %v360 = vmul.f32 %v344, %v359
    %v361 = vadd.f32 %v360, 0.112945676
    %v362 = vmul.f32 %v344, %v361
    %v363 = vadd.f32 %v362, 0.4994258
    %v364 = vmul.f32 %v344, %v363
    %v365 = vadd.f32 %v364, 1.0
    %v366 = vrcp.pop %v365
    %v367 = vmul.f32 %v365, %v366
    %v368 = vsub.f32 1.0, %v367
    %v369 = vmul.f32 %v366, %v368
    %v370 = vadd.f32 %v366, %v369
    %vm371 = vweird.f32 %v365
    %vm372 = vweird.f32 %v366
    %vm373 = vmor %vm371, %vm372
    %v374 = vsel %vm373, %v366, %v370
    %v375 = vand.u32 2147483647, %v365
    %vm376 = vcmp.eq.f32.partialorder %v375, 8.507059e+37
    %v377 = vand.u32 %v365, 2147483648
    %v378 = vor.u32 1.1754944e-38, %v377
    %v379 = vsel %vm376, %v378, %v374
    %v380 = vmul.f32 %v355, %v379
    %v381 = vmin.f32 %v380, 1.0
    %v382 = vmax.f32 %v381, -1.0
    %v383 = vadd.f32 %v262, 1.0
    %v384 = vadd.f32 %v302, 1.0
    %v385 = vadd.f32 %v342, 1.0
    %v386 = vadd.f32 %v382, 1.0
    %v387 = vmul.f32 %v215, %v383
    %v388 = vmul.f32 %v216, %v384
    %v389 = vmul.f32 %v217, %v385
    %v390 = vmul.f32 %v218, %v386
    %v391 = vpack.c.bf16 %v389, %v387
    %v392 = vpack.c.bf16 %v390, %v388
    %v393 = vld [vmem:[#allocation8] sm:$0xf]
    %v394 = vld [vmem:[#allocation8 + $0x4] sm:$0xf]
    %v395 = vld [vmem:[#allocation8 + $0x8] sm:$0xf]
    %v396 = vld [vmem:[#allocation8 + $0xc] sm:$0xf]
    %v397 = vld [vmem:[#allocation8 + $0x10] sm:$0xf]
    %v398 = vld [vmem:[#allocation8 + $0x14] sm:$0xf]
    %v399 = vld [vmem:[#allocation8 + $0x18] sm:$0xf]
    %v400 = vld [vmem:[#allocation8 + $0x1c] sm:$0xf]
    %v401 = vld [vmem:[#allocation8 + $0x20] sm:$0xf]
    %v402 = vld [vmem:[#allocation8 + $0x24] sm:$0xf]
    %v403 = vld [vmem:[#allocation8 + $0x28] sm:$0xf]
    %v404 = vld [vmem:[#allocation8 + $0x2c] sm:$0xf]
    %v405 = vld [vmem:[#allocation8 + $0x30] sm:$0xf]
    %v406 = vld [vmem:[#allocation8 + $0x34] sm:$0xf]
    %v407 = vld [vmem:[#allocation8 + $0x38] sm:$0xf]
    %v408 = vld [vmem:[#allocation8 + $0x3c] sm:$0xf]
    %v409 = vld [vmem:[#allocation8 + $0x40] sm:$0xf]
    %v410 = vld [vmem:[#allocation8 + $0x44] sm:$0xf]
    %v411 = vld [vmem:[#allocation8 + $0x48] sm:$0xf]
    %v412 = vld [vmem:[#allocation8 + $0x4c] sm:$0xf]
    %v413 = vld [vmem:[#allocation8 + $0x50] sm:$0xf]
    %v414 = vld [vmem:[#allocation8 + $0x54] sm:$0xf]
    %v415 = vld [vmem:[#allocation8 + $0x58] sm:$0xf]
    %v416 = vld [vmem:[#allocation8 + $0x5c] sm:$0xf]
    %v417 = vld [vmem:[#allocation8 + $0x60] sm:$0xf]
    %v418 = vld [vmem:[#allocation8 + $0x64] sm:$0xf]
    %v419 = vld [vmem:[#allocation8 + $0x68] sm:$0xf]
    %v420 = vld [vmem:[#allocation8 + $0x6c] sm:$0xf]
    %v421 = vld [vmem:[#allocation8 + $0x70] sm:$0xf]
    %v422 = vld [vmem:[#allocation8 + $0x74] sm:$0xf]
    %v423 = vld [vmem:[#allocation8 + $0x78] sm:$0xf]
    %v424 = vld [vmem:[#allocation8 + $0x7c] sm:$0xf]
    %v425 = vld [vmem:[%s4] sm:$0x1]
    %v427 = vperm.slane %v425, 0
    %v461 = vunpack.c.l.b16 %v393
    %v462 = vunpack.c.l.b16 %v394
    %v463 = vunpack.c.l.b16 %v395
    %v464 = vunpack.c.l.b16 %v396
    %v465 = vunpack.c.l.b16 %v397
    %v466 = vunpack.c.l.b16 %v398
    %v467 = vunpack.c.l.b16 %v399
    %v468 = vunpack.c.l.b16 %v400
    %v469 = vunpack.c.l.b16 %v401
    %v470 = vunpack.c.l.b16 %v402
    %v471 = vunpack.c.l.b16 %v403
    %v472 = vunpack.c.l.b16 %v404
    %v473 = vunpack.c.l.b16 %v405
    %v474 = vunpack.c.l.b16 %v406
    %v475 = vunpack.c.l.b16 %v407
    %v476 = vunpack.c.l.b16 %v408
    %v477 = vunpack.c.l.b16 %v409
    %v478 = vunpack.c.l.b16 %v410
    %v479 = vunpack.c.l.b16 %v411
    %v480 = vunpack.c.l.b16 %v412
    %v481 = vunpack.c.l.b16 %v413
    %v482 = vunpack.c.l.b16 %v414
    %v483 = vunpack.c.l.b16 %v415
    %v484 = vunpack.c.l.b16 %v416
    %v485 = vunpack.c.l.b16 %v417
    %v486 = vunpack.c.l.b16 %v418
    %v487 = vunpack.c.l.b16 %v419
    %v488 = vunpack.c.l.b16 %v420
    %v489 = vunpack.c.l.b16 %v421
    %v490 = vunpack.c.l.b16 %v422
    %v491 = vunpack.c.l.b16 %v423
    %v492 = vunpack.c.l.b16 %v424
    %v493 = vpack.c.b16 %v462, %v461
    %v494 = vpack.c.b16 %v464, %v463
    %v495 = vpack.c.b16 %v466, %v465
    %v496 = vpack.c.b16 %v468, %v467
    %v497 = vpack.c.b16 %v470, %v469
    %v498 = vpack.c.b16 %v472, %v471
    %v499 = vpack.c.b16 %v474, %v473
    %v500 = vpack.c.b16 %v476, %v475
    %v501 = vpack.c.b16 %v478, %v477
    %v502 = vpack.c.b16 %v480, %v479
    %v503 = vpack.c.b16 %v482, %v481
    %v504 = vpack.c.b16 %v484, %v483
    %v505 = vpack.c.b16 %v486, %v485
    %v506 = vpack.c.b16 %v488, %v487
    %v507 = vpack.c.b16 %v490, %v489
    %v508 = vpack.c.b16 %v492, %v491
    %525 = vmatpush.bf16.msra.mxu0 %v500
    %526 = vmatpush.bf16.msra.mxu0 %v499
    %527 = vmatpush.bf16.msra.mxu0 %v498
    %528 = vmatpush.bf16.msra.mxu0 %v497
    %529 = vmatpush.bf16.msra.mxu0 %v496
    %530 = vmatpush.bf16.msra.mxu0 %v495
    %531 = vmatpush.bf16.msra.mxu0 %v494
    %532 = vmatpush.bf16.msra.mxu0 %v493
    %533 = vmatmul.bf16.gmra.mxu0 %v391
    %v534 = vpop.f32.mrf.mxu0
    %v535 = vadd.f32 %v427, %v534
    %v536 = vpop.f32.mrf.mxu0
    %v537 = vadd.f32 %v427, %v536
    %538 = vdwg.mxu0
    %539 = vmatpush.bf16.msra.mxu0 %v508
    %540 = vmatpush.bf16.msra.mxu0 %v507
    %541 = vmatpush.bf16.msra.mxu0 %v506
    %542 = vmatpush.bf16.msra.mxu0 %v505
    %543 = vmatpush.bf16.msra.mxu0 %v504
    %544 = vmatpush.bf16.msra.mxu0 %v503
    %545 = vmatpush.bf16.msra.mxu0 %v502
    %546 = vmatpush.bf16.msra.mxu0 %v501
    %547 = vmatmul.bf16.gmra.mxu0 %v392
    %v548 = vpop.f32.mrf.mxu0
    %v549 = vadd.f32 %v535, %v548
    %v550 = vpop.f32.mrf.mxu0
    %v551 = vadd.f32 %v537, %v550
    %552 = vdwg.mxu0
    %553 = vst [vmem:[#allocation10] sm:$0xff] %v549
    %554 = vst [vmem:[#allocation10 + $0x8] sm:$0xff] %v551
    // Predicated region
    $region38: #{tpu_custom_call.1} parent=1 // pred_check
      _
    $region39: #{tpu_custom_call.1} parent=1 // pred_check_branch
      %556 = sbr.rel (0) target = $region41
    $region40: #{tpu_custom_call.1} parent=1 // pred_region
      %558 = vsyncadd [#allocation4], 0
      %s559 = sshll.u32 [#allocation10], 4
      %s560 = int_to_ptr.vmem [resolvable:$true] %s559
      %s561 = sshll.u32 %s5, 4
      %s562 = int_to_ptr.hbm [resolvable:$true] %s561
      %567 = dma.vmem_to_hbm [thread:$0]  %s560, 256, %s562, [#allocation4], 128, 128, 8
    $region41: #{tpu_custom_call.1} parent=1 // pred_fallthru
      _
    // Predicated region
    $region42: #{tpu_custom_call.1} parent=1 // pred_check
      _
    $region43: #{tpu_custom_call.1} parent=1 // pred_check_branch
      %569 = sbr.rel (0) target = $region45
    $region44: #{tpu_custom_call.1} parent=1 // pred_region
      %571 = dma.done [#allocation4], 256
    $region45: #{tpu_custom_call.1} parent=1 // pred_fallthru
      _
    %572 = vsyncpa [#allocation3], 1
    %573 = vsyncpa [#allocation6], 1
    %574 = vsyncpa [#allocation9], 1
    %575 = vsyncpa [#allocation4], 1

</llo_original>
